<compile_context>
chip_gen: v7x
topology: tpu7x:2x2x1
jax: 0.10.0
libtpu: 0.0.40
codegen_flags: <defaults>
</compile_context>

<pallas_src>
import functools

import jax
import jax.numpy as jnp
from jax import lax
from jax.experimental import pallas as pl
from jax.experimental.pallas import tpu as pltpu

LANE = 128
TILE_BYTES = 4 << 20          # per-buffer tile cap (~roofline-saturating size)
MIN_ROW_BLOCKS = 8            # aim for >= 8 row blocks (>= 4 per TC on v7x)
VMEM_LIMIT = 48 << 20         # scoped VMEM limit; safely under v7x's 64 MiB/TC
SPATIAL_SPLIT_BYTES = 8 << 20 # switch to spatial-split path beyond this
HW_BLOCK = 8192               # spatial chunk (multiple of 128) for split path


def _round_up(n, m):
    return ((n + m - 1) // m) * m


def _sublane_multiple(dtype):
    # vreg sublane packing: 8 rows for 32-bit, 16 for 16-bit, 32 for 8-bit.
    return max(8, 32 // jnp.dtype(dtype).itemsize)


def _row_block(rows, row_bytes, sub):
    """Rows per block: a sublane multiple, capped by TILE_BYTES, targeting
    >= MIN_ROW_BLOCKS equal-sized grid steps when there are enough rows."""
    units_total = -(-rows // sub)          # ceil(rows / sub)
    if units_total <= 1:
        return rows                        # single full-dim block
    units_vmem = max(1, TILE_BYTES // (sub * row_bytes))
    units_steps = max(1, units_total // MIN_ROW_BLOCKS)
    units = min(units_vmem, units_steps)
    block_rows = units * sub
    return rows if block_rows >= rows else block_rows


# --------------------------------------------------------------------------
# Fused single-pass kernel (whole H*W resident per row block).
# --------------------------------------------------------------------------
def _instance_norm_kernel(x_ref, o_ref, *, epsilon, hw, denom):
    # x_ref: (block_rows, hw); o_ref: (block_rows, hw_pad) with hw_pad >= hw.
    x = x_ref[...]
    # Stats accumulate in f32 regardless of input dtype.
    s1 = jnp.sum(x, axis=-1, keepdims=True, dtype=jnp.float32)
    mean = s1 * (1.0 / hw)
    # Normalize stays in the input dtype (no full f32 upcast of bf16 tiles).
    centered = x - mean.astype(x.dtype)
    # Two-pass variance: sum of squared deviations (no cancellation), f32 acc.
    var = jnp.sum(centered * centered, axis=-1, keepdims=True,
                  dtype=jnp.float32) * (1.0 / denom)
    inv_std = lax.rsqrt(var + epsilon)
    vals = (centered * inv_std.astype(x.dtype)).astype(o_ref.dtype)

    hw_pad = o_ref.shape[-1]
    if hw_pad == hw:
        o_ref[...] = vals
    else:
        # Lane-dense padded writeback: zero the block, then store real values.
        o_ref[...] = jnp.zeros_like(o_ref)
        o_ref[:, pl.ds(0, hw)] = vals


def _instance_norm_fused(x2d, epsilon, denom, sub, itemsize):
    rows, hw = x2d.shape
    hw_pad = _round_up(hw, LANE)           # lane-dense output writeback
    row_bytes = hw_pad * itemsize
    block_rows = _row_block(rows, row_bytes, sub)
    grid = (pl.cdiv(rows, block_rows),)

    kernel = functools.partial(_instance_norm_kernel,
                               epsilon=epsilon, hw=hw, denom=denom)

    out = pl.pallas_call(
        kernel,
        out_shape=jax.ShapeDtypeStruct((rows, hw_pad), x2d.dtype),
        grid_spec=pltpu.PrefetchScalarGridSpec(
            num_scalar_prefetch=0,
            grid=grid,
            in_specs=[pl.BlockSpec((block_rows, hw), lambda i: (i, 0))],
            out_specs=pl.BlockSpec((block_rows, hw_pad), lambda i: (i, 0)),
        ),
        compiler_params=pltpu.CompilerParams(
            dimension_semantics=("parallel",),
            vmem_limit_bytes=VMEM_LIMIT,
        ),
    )(x2d)

    if hw_pad != hw:
        out = out[:, :hw]
    return out


# --------------------------------------------------------------------------
# Spatial-split path for very large H*W: stats pass + normalize pass.
# --------------------------------------------------------------------------
def _stats_kernel(x_ref, mean_ref, rstd_ref, s1_ref, s2_ref, *,
                  epsilon, hw, denom):
    k = pl.program_id(1)

    @pl.when(k == 0)
    def _init():
        s1_ref[...] = jnp.zeros_like(s1_ref)
        s2_ref[...] = jnp.zeros_like(s2_ref)

    x = x_ref[...]
    # Zero-padded spatial columns contribute 0 to both sums; divisors use the
    # true hw, so padding does not perturb the statistics.
    s1_ref[...] += jnp.sum(x, axis=-1, keepdims=True, dtype=jnp.float32)
    s2_ref[...] += jnp.sum(x * x, axis=-1, keepdims=True, dtype=jnp.float32)

    @pl.when(k == pl.num_programs(1) - 1)
    def _finalize():
        s1 = s1_ref[...]
        mean = s1 * (1.0 / hw)
        var = jnp.maximum(s2_ref[...] - s1 * mean, 0.0) * (1.0 / denom)
        mean_ref[...] = mean
        rstd_ref[...] = lax.rsqrt(var + epsilon)


def _apply_kernel(x_ref, mean_ref, rstd_ref, o_ref):
    x = x_ref[...]
    mean = mean_ref[...].astype(x.dtype)
    rstd = rstd_ref[...].astype(x.dtype)
    o_ref[...] = ((x - mean) * rstd).astype(o_ref.dtype)


def _instance_norm_spatial_split(x2d, epsilon, denom, sub, itemsize):
    rows, hw = x2d.shape
    hw_pad = _round_up(hw, HW_BLOCK)
    if hw_pad != hw:
        x2d = jnp.pad(x2d, ((0, 0), (0, hw_pad - hw)))
    hw_blocks = hw_pad // HW_BLOCK

    block_rows = _row_block(rows, HW_BLOCK * itemsize, sub)
    row_blocks = pl.cdiv(rows, block_rows)

    stats_kernel = functools.partial(_stats_kernel,
                                     epsilon=epsilon, hw=hw, denom=denom)
    mean, rstd = pl.pallas_call(
        stats_kernel,
        out_shape=(jax.ShapeDtypeStruct((rows, 1), jnp.float32),
                   jax.ShapeDtypeStruct((rows, 1), jnp.float32)),
        grid_spec=pltpu.PrefetchScalarGridSpec(
            num_scalar_prefetch=0,
            grid=(row_blocks, hw_blocks),
            in_specs=[pl.BlockSpec((block_rows, HW_BLOCK), lambda i, k: (i, k))],
            out_specs=(pl.BlockSpec((block_rows, 1), lambda i, k: (i, 0)),
                       pl.BlockSpec((block_rows, 1), lambda i, k: (i, 0))),
            scratch_shapes=[pltpu.VMEM((block_rows, 1), jnp.float32),
                            pltpu.VMEM((block_rows, 1), jnp.float32)],
        ),
        compiler_params=pltpu.CompilerParams(
            dimension_semantics=("parallel", "arbitrary"),
            vmem_limit_bytes=VMEM_LIMIT,
        ),
    )(x2d)

    out = pl.pallas_call(
        _apply_kernel,
        out_shape=jax.ShapeDtypeStruct((rows, hw_pad), x2d.dtype),
        grid_spec=pltpu.PrefetchScalarGridSpec(
            num_scalar_prefetch=0,
            grid=(row_blocks, hw_blocks),
            in_specs=[pl.BlockSpec((block_rows, HW_BLOCK), lambda i, k: (i, k)),
                      pl.BlockSpec((block_rows, 1), lambda i, k: (i, 0)),
                      pl.BlockSpec((block_rows, 1), lambda i, k: (i, 0))],
            out_specs=pl.BlockSpec((block_rows, HW_BLOCK), lambda i, k: (i, k)),
        ),
        compiler_params=pltpu.CompilerParams(
            dimension_semantics=("parallel", "parallel"),
            vmem_limit_bytes=VMEM_LIMIT,
        ),
    )(x2d, mean, rstd)

    if hw_pad != hw:
        out = out[:, :hw]
    return out


# --------------------------------------------------------------------------
# Public wrapper.
# --------------------------------------------------------------------------
def instance_normalization(x, epsilon=1e-6):
    """x: (N, C, H, W). Returns instance-normalized array, same shape/dtype."""
    N, C, H, W = x.shape
    hw = H * W
    rows = N * C
    denom = max(hw - 1, 1)                 # torch.var default: unbiased
    itemsize = jnp.dtype(x.dtype).itemsize
    sub = _sublane_multiple(x.dtype)

    x2d = x.reshape(rows, hw)
    min_block_bytes = sub * hw * itemsize  # smallest single-pass row block
    if min_block_bytes > SPATIAL_SPLIT_BYTES:
        out2d = _instance_norm_spatial_split(x2d, epsilon, denom, sub, itemsize)
    else:
        out2d = _instance_norm_fused(x2d, epsilon, denom, sub, itemsize)
    return out2d.reshape(N, C, H, W)


def _reference(x, epsilon=1e-6):
    mean = jnp.mean(x, axis=(2, 3), keepdims=True)
    var = jnp.var(x, axis=(2, 3), keepdims=True, ddof=1)  # unbiased, like torch.var
    return (x - mean) / jnp.sqrt(var + epsilon)


if __name__ == "__main__":
    key = jax.random.PRNGKey(0)
    x = jax.random.normal(key, (2, 4, 16, 16), dtype=jnp.float32)

    out = jax.block_until_ready(instance_normalization(x, epsilon=1e-6))
    ref = _reference(x, epsilon=1e-6)
    assert out.shape == x.shape and out.dtype == x.dtype
    assert jnp.allclose(out, ref, atol=1e-5, rtol=1e-5), "mismatch vs reference"

    # Also exercise the lane-padded output path (H*W not a multiple of 128).
    x2 = jax.random.normal(jax.random.PRNGKey(1), (2, 3, 5, 7), dtype=jnp.float32)
    out2 = jax.block_until_ready(instance_normalization(x2, epsilon=1e-6))
    assert jnp.allclose(out2, _reference(x2), atol=1e-5, rtol=1e-5), \
        "mismatch vs reference (padded path)"

    print("KERNEL_OK")
</pallas_src>

<mosaic_0001>
module attributes {stable_mosaic.version = 11 : i64} {
  func.func @_instance_norm_kernel(%arg0: i32, %arg1: memref<8x256xf32, #tpu.memory_space<vmem>>, %arg2: memref<8x256xf32, #tpu.memory_space<vmem>>) attributes {dimension_semantics = [#tpu.dimension_semantics<parallel>], iteration_bounds = array<i64: 1>, scalar_prefetch = 0 : i64, scratch_operands = 0 : i64, tpu.core_type = #tpu.core_type<tc>, window_params = [{transform_indices = @transform_0, window_bounds = array<i64: 8, 256>}, {transform_indices = @transform_1, window_bounds = array<i64: 8, 256>}]} {
    %c0 = arith.constant 0 : index
    %c0_0 = arith.constant 0 : index
    %0 = vector.load %arg1[%c0, %c0_0] : memref<8x256xf32, #tpu.memory_space<vmem>>, vector<8x256xf32>
    %cst = arith.constant dense<0.000000e+00> : vector<8xf32>
    %1 = vector.multi_reduction <add>, %0, %cst [1] : vector<8x256xf32> to vector<8xf32>
    %2 = vector.shape_cast %1 : vector<8xf32> to vector<8x1xf32>
    %cst_1 = arith.constant 3.906250e-03 : f32
    %3 = vector.broadcast %cst_1 : f32 to vector<8x1xf32>
    %4 = arith.mulf %2, %3 : vector<8x1xf32>
    %5 = vector.broadcast %4 : vector<8x1xf32> to vector<8x256xf32>
    %6 = arith.subf %0, %5 : vector<8x256xf32>
    %7 = arith.mulf %6, %6 : vector<8x256xf32>
    %cst_2 = arith.constant dense<0.000000e+00> : vector<8xf32>
    %8 = vector.multi_reduction <add>, %7, %cst_2 [1] : vector<8x256xf32> to vector<8xf32>
    %9 = vector.shape_cast %8 : vector<8xf32> to vector<8x1xf32>
    %cst_3 = arith.constant 0.00392156886 : f32
    %10 = vector.broadcast %cst_3 : f32 to vector<8x1xf32>
    %11 = arith.mulf %9, %10 : vector<8x1xf32>
    %cst_4 = arith.constant 9.99999997E-7 : f32
    %12 = vector.broadcast %cst_4 : f32 to vector<8x1xf32>
    %13 = arith.addf %11, %12 : vector<8x1xf32>
    %14 = math.rsqrt %13 : vector<8x1xf32>
    %15 = vector.broadcast %14 : vector<8x1xf32> to vector<8x256xf32>
    %16 = arith.mulf %6, %15 : vector<8x256xf32>
    %c0_5 = arith.constant 0 : index
    %c0_6 = arith.constant 0 : index
    %17 = vector.load %arg2[%c0_5, %c0_6] : memref<8x256xf32, #tpu.memory_space<vmem>>, vector<8x256xf32>
    tpu.vector_store %arg2[%c0_5, %c0_6], %16 {strides = array<i32>} : memref<8x256xf32, #tpu.memory_space<vmem>>, vector<8x256xf32>,
    return
  }
  func.func @transform_0(%arg0: i32) -> (i32, i32) {
    %c0_i32 = arith.constant 0 : i32
    %c0_i32_0 = arith.constant 0 : i32
    return %arg0, %c0_i32 : i32, i32
  }
  func.func @transform_1(%arg0: i32) -> (i32, i32) {
    %c0_i32 = arith.constant 0 : i32
    %c0_i32_0 = arith.constant 0 : i32
    return %arg0, %c0_i32 : i32, i32
  }
}

</mosaic_0001>

<llo_original>
// kernel: tpu_custom_call.1
$region0: #{tpu_custom_call.1}
  #allocation0 [shape = 'u32[]', space=smem, size = 0x4, offset = 0x4, fixed_abs, tag = 'smem constant byte address 0x4 - core index']
  #allocation1 [shape = 'u32[144,128]{1,0:T(1,128)}', space=vmem, size = 0x12000, scoped, tag = 'internal scratch']
  %s0 = inlined_call_operand.hbm [shape: f32[8,256], index: 0, kind: input, shape index: {}]
  %s1 = inlined_call_operand.hbm [shape: f32[8,256], index: 1, kind: output, shape index: {}]
  %s2 = sld [smem:[#allocation0]]
  $region18: #{tpu_custom_call.1} parent=0
    _
  %s4 = ssub.s32 1, %s2
  %s5 = scalar_select 0, %s4, %s2
  $region1: #{tpu_custom_call.1} parent=0
    #allocation2 [shape = 'u8[8192]{0}', space=vmem, size = 0x2000, scoped, tag = 'input window, operand 0, single buffered']
    #allocation3 [shape = 's32[1]{0}', space=sflag, size = 0x4, scoped, tag = 'scoped memory for tpu_custom_call.1']
    #allocation4 [shape = 's32[1]{0}', space=sflag, size = 0x4, scoped, tag = 'scoped memory for tpu_custom_call.1']
    #allocation5 [shape = 'u8[8192]{0}', space=vmem, size = 0x2000, scoped, tag = 'output window, operand 0, single buffered']
    %6 = vsyncpa [#allocation3], 0
    %7 = vsyncpa [#allocation4], 0
    // Predicated region
    $region2: #{tpu_custom_call.1} parent=1 // pred_check
      _
    $region3: #{tpu_custom_call.1} parent=1 // pred_check_branch
      %9 = sbr.rel (0) target = $region5
    $region4: #{tpu_custom_call.1} parent=1 // pred_region
      %s11 = ssub.s32 256, 256
      %12 = vsyncadd [#allocation3], %s11
      %s14 = sshll.u32 [#allocation2], 4
      %s15 = int_to_ptr.vmem [resolvable:$true] %s14
      %17 = dma.hbm_to_vmem [thread:$0]  %s0, 256, %s15, [#allocation3]
    $region5: #{tpu_custom_call.1} parent=1 // pred_fallthru
      _
    // Predicated region
    $region6: #{tpu_custom_call.1} parent=1 // pred_check
      _
    $region7: #{tpu_custom_call.1} parent=1 // pred_check_branch
      %19 = sbr.rel (0) target = $region9
    $region8: #{tpu_custom_call.1} parent=1 // pred_region
      %20 = dma.done [#allocation3], 256
    $region9: #{tpu_custom_call.1} parent=1 // pred_fallthru
      _
    %v21 = vld [vmem:[#allocation2] sm:$0xff]
    %v22 = vld [vmem:[#allocation2 + $0x8] sm:$0xff]
    %v23 = vadd.f32 %v21, %v22
    %24 = vadd.xlane.f32.xlu0 %v23
    %v25 = vpop.xlane.xlu0 %24
    %v26 = vmul.f32 %v25, 0.00390625
    %v27 = vsub.f32 %v21, %v26
    %v28 = vsub.f32 %v22, %v26
    %v29 = vmul.f32 %v27, %v27
    %v30 = vmul.f32 %v28, %v28
    %v31 = vadd.f32 %v29, %v30
    %32 = vadd.xlane.f32.xlu0 %v31
    %v33 = vpop.xlane.xlu0 %32
    %v34 = vmul.f32 %v33, 0.003921569
    %v35 = vadd.f32 %v34, 1e-06
    %v36 = vrsqrt.pop %v35
    %v37 = vmul.f32 %v27, %v36
    %v38 = vmul.f32 %v28, %v36
    %39 = vst [vmem:[#allocation5] sm:$0xff] %v37
    %40 = vst [vmem:[#allocation5 + $0x8] sm:$0xff] %v38
    // Predicated region
    $region10: #{tpu_custom_call.1} parent=1 // pred_check
      _
    $region11: #{tpu_custom_call.1} parent=1 // pred_check_branch
      %42 = sbr.rel (0) target = $region13
    $region12: #{tpu_custom_call.1} parent=1 // pred_region
      %s44 = ssub.s32 256, 256
      %45 = vsyncadd [#allocation4], %s44
      %s47 = sshll.u32 [#allocation5], 4
      %s48 = int_to_ptr.vmem [resolvable:$true] %s47
      %50 = dma.vmem_to_hbm [thread:$0]  %s48, 256, %s1, [#allocation4]
    $region13: #{tpu_custom_call.1} parent=1 // pred_fallthru
      _
    // Predicated region
    $region14: #{tpu_custom_call.1} parent=1 // pred_check
      _
    $region15: #{tpu_custom_call.1} parent=1 // pred_check_branch
      %52 = sbr.rel (0) target = $region17
    $region16: #{tpu_custom_call.1} parent=1 // pred_region
      %53 = dma.done [#allocation4], 256
    $region17: #{tpu_custom_call.1} parent=1 // pred_fallthru
      _
    %54 = vsyncpa [#allocation3], 1
    %55 = vsyncpa [#allocation4], 1

</llo_original>
